<compile_context>
chip_gen: v7x
topology: tpu7x:2x2x1
jax: 0.10.0
libtpu: 0.0.40
codegen_flags: <defaults>
</compile_context>

<pallas_src>
import math
from functools import partial

import jax
import jax.numpy as jnp
from jax.experimental import pallas as pl
from jax.experimental.pallas import tpu as pltpu


def attention_block_kernel(x_ref, w_ref, b_ref, o_ref, *,
                           k_size, v_size, inv_sqrt_k,
                           matmul_dtype, approx_recip):
    Bb, T, D = x_ref.shape
    K, V = k_size, v_size
    F = 2 * K + V

    x = x_ref[...]                                   # (Bb, T, D), input dtype
    x2d = x.reshape(Bb * T, D)

    # --- fused QKV projection: one MXU call, bias added once in f32 ---------
    qkv = jnp.dot(x2d.astype(matmul_dtype), w_ref[...],
                  preferred_element_type=jnp.float32) + b_ref[...]   # (Bb*T, F)

    keys    = qkv[:, 0:K].reshape(Bb, T, K)
    queries = qkv[:, K:2 * K].reshape(Bb, T, K)
    values  = qkv[:, 2 * K:F].reshape(Bb, T, V)

    # --- logits[b, i, j] = <q_i, k_j>  (contract last dims, no transpose) ---
    logits = jnp.einsum("bik,bjk->bij",
                        queries.astype(matmul_dtype),
                        keys.astype(matmul_dtype),
                        preferred_element_type=jnp.float32)          # (Bb, T, T)

    # strictly-upper-triangular mask (j > i); large finite negative so the
    # softmax never sees exp(-inf - -inf).  2-D iotas broadcast over batch.
    row = jax.lax.broadcasted_iota(jnp.int32, (T, T), 0)
    col = jax.lax.broadcasted_iota(jnp.int32, (T, T), 1)
    keep = (col <= row)[None, :, :]                                  # (1, T, T)
    logits = jnp.where(keep, logits, jnp.float32(-1e30))

    # torch: F.softmax(logits, dim=1) / sqrt(k)  -> softmax over the *query*
    # axis (axis 1 of (Bb, T, T)); fold 1/sqrt(k) into the per-column
    # reciprocal (EUP slot) so the TxT path keeps a single multiply.
    m = jnp.max(logits, axis=1, keepdims=True)                       # (Bb, 1, T)
    e = jnp.exp(logits - m)
    denom = jnp.sum(e, axis=1, keepdims=True)                        # (Bb, 1, T)
    inv = pl.reciprocal(denom, approx=approx_recip) * inv_sqrt_k
    probs = e * inv                                                  # (Bb, T, T)

    # --- value read ----------------------------------------------------------
    read = jnp.einsum("bij,bjv->biv",
                      probs.astype(matmul_dtype),
                      values.astype(matmul_dtype),
                      preferred_element_type=jnp.float32)            # (Bb, T, V)

    # residual add in f32, single deliberate cast to the output dtype
    o_ref[...] = (x.astype(jnp.float32) + read).astype(o_ref.dtype)


def attention_block(x, w_key, b_key, w_query, b_query, w_value, b_value, k_size,
                    *, batch_block=None, matmul_dtype=None, approx_recip=True):
    """x: (B, T, D); w_*: (out, in) like nn.Linear.weight; b_*: (out,).

    matmul_dtype: dtype of the MXU operands (accumulation stays f32).  Pass
        jnp.bfloat16 on v6e/v7x for higher MXU throughput; defaults to x.dtype
        so f32 inputs keep torch-f32 semantics.
    approx_recip: use the EUP approximate reciprocal for the softmax
        normalization (set False for bit-tighter numerics).
    """
    B, T, D = x.shape
    K = w_key.shape[0]
    V = w_value.shape[0]
    assert K == k_size
    assert V == D, "residual add requires v_size == dims (as in the torch module)"

    if matmul_dtype is None:
        matmul_dtype = x.dtype

    # batches per grid step: amortize per-step overhead and fill MXU rows via
    # the flattened (Bb*T, D) projection, keep >=2 grid steps for the two v7x
    # TensorCores, and keep the (T,T) temporaries bounded in VMEM.
    if batch_block is None:
        score_bytes = 4 * T * T * 4                      # logits/e/probs + margin
        cap = max(1, (8 * 1024 * 1024) // max(score_bytes, 1))
        batch_block = max(1, min(B // 2 if B > 1 else 1, cap))
    while B % batch_block:
        batch_block -= 1
    grid_b = B // batch_block

    F = 2 * K + V
    # Fused QKV: x @ [Wk^T | Wq^T | Wv^T] + [bk | bq | bv]
    w_qkv = jnp.concatenate([w_key.T, w_query.T, w_value.T], axis=1).astype(matmul_dtype)
    b_qkv = jnp.concatenate([b_key, b_query, b_value]).reshape(1, F).astype(jnp.float32)

    kernel = partial(attention_block_kernel,
                     k_size=K, v_size=V,
                     inv_sqrt_k=1.0 / math.sqrt(k_size),
                     matmul_dtype=matmul_dtype,
                     approx_recip=approx_recip)

    # Scheduler hint + VMEM budget
    flops = 2 * B * T * D * F + 2 * B * T * T * K + 2 * B * T * T * V
    transcendentals = B * T * T + B * T
    itemsize = jnp.dtype(x.dtype).itemsize
    bytes_accessed = 2 * B * T * D * itemsize + (D * F + F) * 4
    vmem_est = (4 * batch_block * T * D * itemsize                 # 2x-buffered in/out blocks
                + 2 * (D * F + F) * 4                              # weights + bias
                + 4 * batch_block * (T * F + 3 * T * T + T * V) * 4)  # temporaries + margin
    vmem_limit = int(min(max(vmem_est, 16 * 1024 * 1024), 64 * 1024 * 1024))

    return pl.pallas_call(
        kernel,
        out_shape=jax.ShapeDtypeStruct((B, T, D), x.dtype),
        grid_spec=pltpu.PrefetchScalarGridSpec(
            num_scalar_prefetch=0,
            grid=(grid_b,),
            in_specs=[
                pl.BlockSpec((batch_block, T, D), lambda b: (b, 0, 0)),  # x slab
                pl.BlockSpec((D, F), lambda b: (0, 0)),                  # fused W_qkv
                pl.BlockSpec((1, F), lambda b: (0, 0)),                  # fused bias
            ],
            out_specs=pl.BlockSpec((batch_block, T, D), lambda b: (b, 0, 0)),
        ),
        compiler_params=pltpu.CompilerParams(
            dimension_semantics=("parallel",),
            vmem_limit_bytes=vmem_limit),
        cost_estimate=pl.CostEstimate(flops=flops,
                                      transcendentals=transcendentals,
                                      bytes_accessed=bytes_accessed),
    )(x, w_qkv, b_qkv)


def attention_block_ref(x, w_key, b_key, w_query, b_query, w_value, b_value, k_size):
    """Pure-JAX reference mirroring the torch forward exactly."""
    keys = x @ w_key.T + b_key
    queries = x @ w_query.T + b_query
    values = x @ w_value.T + b_value
    logits = jnp.einsum("btk,bsk->bts", queries, keys)
    T = logits.shape[1]
    mask = jnp.triu(jnp.ones((T, T), dtype=bool), k=1)
    logits = jnp.where(mask[None], -jnp.inf, logits)
    probs = jax.nn.softmax(logits, axis=1) / math.sqrt(k_size)
    read = jnp.einsum("bts,bsv->btv", probs, values)
    return x + read


if __name__ == "__main__":
    B, T, D = 2, 16, 32      # dims = 32
    K = 16                   # k_size
    V = D                    # v_size must equal dims for the residual add

    key = jax.random.PRNGKey(0)
    kx, k1, k2, k3, k4, k5, k6 = jax.random.split(key, 7)

    x = jax.random.normal(kx, (B, T, D), dtype=jnp.float32)

    # deterministic nn.Linear-style parameters (uniform in +/- 1/sqrt(fan_in))
    bound = 1.0 / math.sqrt(D)
    w_key = jax.random.uniform(k1, (K, D), minval=-bound, maxval=bound, dtype=jnp.float32)
    b_key = jax.random.uniform(k2, (K,), minval=-bound, maxval=bound, dtype=jnp.float32)
    w_query = jax.random.uniform(k3, (K, D), minval=-bound, maxval=bound, dtype=jnp.float32)
    b_query = jax.random.uniform(k4, (K,), minval=-bound, maxval=bound, dtype=jnp.float32)
    w_value = jax.random.uniform(k5, (V, D), minval=-bound, maxval=bound, dtype=jnp.float32)
    b_value = jax.random.uniform(k6, (V,), minval=-bound, maxval=bound, dtype=jnp.float32)

    ref = attention_block_ref(x, w_key, b_key, w_query, b_query, w_value, b_value, K)

    # 1) default fast path: fused QKV + approx EUP reciprocal (f32 MXU operands)
    out = attention_block(x, w_key, b_key, w_query, b_query, w_value, b_value, K)
    out = jax.block_until_ready(out)
    assert out.shape == (B, T, D)
    assert jnp.allclose(out, ref, atol=1e-2, rtol=1e-2), "fast path mismatch vs reference"

    # 2) exact-math path: same kernel with exact reciprocal, tight tolerance
    out_exact = attention_block(x, w_key, b_key, w_query, b_query, w_value, b_value, K,
                                approx_recip=False)
    out_exact = jax.block_until_ready(out_exact)
    assert jnp.allclose(out_exact, ref, atol=1e-5, rtol=1e-5), "exact path mismatch vs reference"

    # 3) bf16 MXU-operand path (v6e/v7x throughput), f32 accumulation
    out_bf16 = attention_block(x, w_key, b_key, w_query, b_query, w_value, b_value, K,
                               matmul_dtype=jnp.bfloat16)
    out_bf16 = jax.block_until_ready(out_bf16)
    assert jnp.allclose(out_bf16, ref, atol=5e-2, rtol=5e-2), "bf16 path mismatch vs reference"

    print("KERNEL_OK")
</pallas_src>

<mosaic_0001>
module attributes {stable_mosaic.version = 11 : i64} {
  func.func @attention_block_kernel(%arg0: i32, %arg1: memref<1x16x32xf32, #tpu.memory_space<vmem>>, %arg2: memref<32x64xf32, #tpu.memory_space<vmem>>, %arg3: memref<1x64xf32, #tpu.memory_space<vmem>>, %arg4: memref<1x16x32xf32, #tpu.memory_space<vmem>>) attributes {dimension_semantics = [#tpu.dimension_semantics<parallel>], iteration_bounds = array<i64: 2>, scalar_prefetch = 0 : i64, scratch_operands = 0 : i64, tpu.core_type = #tpu.core_type<tc>, window_params = [{transform_indices = @transform_0, window_bounds = array<i64: 1, 16, 32>}, {pipeline_mode = #tpu.pipeline_mode<synchronous>, transform_indices = @transform_1, window_bounds = array<i64: 32, 64>}, {pipeline_mode = #tpu.pipeline_mode<synchronous>, transform_indices = @transform_2, window_bounds = array<i64: 1, 64>}, {transform_indices = @transform_3, window_bounds = array<i64: 1, 16, 32>}]} {
    %c0 = arith.constant 0 : index
    %c0_0 = arith.constant 0 : index
    %c0_1 = arith.constant 0 : index
    %0 = vector.load %arg1[%c0, %c0_0, %c0_1] : memref<1x16x32xf32, #tpu.memory_space<vmem>>, vector<1x16x32xf32>
    %1 = vector.shape_cast %0 : vector<1x16x32xf32> to vector<16x32xf32>
    %c0_2 = arith.constant 0 : index
    %c0_3 = arith.constant 0 : index
    %2 = vector.load %arg2[%c0_2, %c0_3] : memref<32x64xf32, #tpu.memory_space<vmem>>, vector<32x64xf32>
    %cst = arith.constant dense<0.000000e+00> : vector<16x64xf32>
    %3 = tpu.matmul %1, %2, %cst {dimension_numbers = #tpu.dot_dimension_numbers<[1], [0], [0], [1], [0, 0, 1, 1], [], []>} : vector<16x32xf32>, vector<32x64xf32>, vector<16x64xf32> -> vector<16x64xf32>
    %c0_4 = arith.constant 0 : index
    %c0_5 = arith.constant 0 : index
    %4 = vector.load %arg3[%c0_4, %c0_5] : memref<1x64xf32, #tpu.memory_space<vmem>>, vector<1x64xf32>
    %5 = vector.broadcast %4 : vector<1x64xf32> to vector<16x64xf32>
    %6 = arith.addf %3, %5 : vector<16x64xf32>
    %7 = vector.extract_strided_slice %6 {offsets = [0, 0], sizes = [16, 16], strides = [1, 1]} : vector<16x64xf32> to vector<16x16xf32>
    %8 = vector.shape_cast %7 : vector<16x16xf32> to vector<1x16x16xf32>
    %9 = vector.extract_strided_slice %6 {offsets = [0, 16], sizes = [16, 16], strides = [1, 1]} : vector<16x64xf32> to vector<16x16xf32>
    %10 = vector.shape_cast %9 : vector<16x16xf32> to vector<1x16x16xf32>
    %11 = vector.extract_strided_slice %6 {offsets = [0, 32], sizes = [16, 32], strides = [1, 1]} : vector<16x64xf32> to vector<16x32xf32>
    %12 = vector.shape_cast %11 : vector<16x32xf32> to vector<1x16x32xf32>
    "tpu.trace_start"() <{level = 10 : i32, message = "bik,bjk->bij"}> : () -> ()
    %cst_6 = arith.constant dense<0.000000e+00> : vector<1x16x16xf32>
    %13 = tpu.matmul %10, %8, %cst_6 {dimension_numbers = #tpu.dot_dimension_numbers<[2], [2], [1], [1], [0, 0, 0, 1, 1, 1], [0], [0]>} : vector<1x16x16xf32>, vector<1x16x16xf32>, vector<1x16x16xf32> -> vector<1x16x16xf32>
    "tpu.trace_stop"() : () -> ()
    %14 = tpu.iota {dimensions = array<i32: 0>} : vector<16x16xi32>
    %15 = tpu.iota {dimensions = array<i32: 1>} : vector<16x16xi32>
    %16 = arith.cmpi sle, %15, %14 : vector<16x16xi32>
    %17 = vector.shape_cast %16 : vector<16x16xi1> to vector<1x16x16xi1>
    %cst_7 = arith.constant -1.000000e+30 : f32
    %18 = vector.broadcast %cst_7 : f32 to vector<1x16x16xf32>
    %19 = arith.select %17, %13, %18 : vector<1x16x16xi1>, vector<1x16x16xf32>
    %cst_8 = arith.constant dense<0xFF800000> : vector<1x16xf32>
    %20 = vector.multi_reduction <maximumf>, %19, %cst_8 [1] : vector<1x16x16xf32> to vector<1x16xf32>
    %21 = vector.shape_cast %20 : vector<1x16xf32> to vector<1x1x16xf32>
    %22 = vector.broadcast %21 : vector<1x1x16xf32> to vector<1x16x16xf32>
    %23 = arith.subf %19, %22 : vector<1x16x16xf32>
    %24 = math.exp %23 : vector<1x16x16xf32>
    %cst_9 = arith.constant dense<0.000000e+00> : vector<1x16xf32>
    %25 = vector.multi_reduction <add>, %24, %cst_9 [1] : vector<1x16x16xf32> to vector<1x16xf32>
    %26 = vector.shape_cast %25 : vector<1x16xf32> to vector<1x1x16xf32>
    %27 = tpu.reciprocal %26 {approx = true} : vector<1x1x16xf32> -> vector<1x1x16xf32>
    %cst_10 = arith.constant 2.500000e-01 : f32
    %28 = vector.broadcast %cst_10 : f32 to vector<1x1x16xf32>
    %29 = arith.mulf %27, %28 : vector<1x1x16xf32>
    %30 = vector.broadcast %29 : vector<1x1x16xf32> to vector<1x16x16xf32>
    %31 = arith.mulf %24, %30 : vector<1x16x16xf32>
    "tpu.trace_start"() <{level = 10 : i32, message = "bij,bjv->biv"}> : () -> ()
    %cst_11 = arith.constant dense<0.000000e+00> : vector<1x16x32xf32>
    %32 = tpu.matmul %31, %12, %cst_11 {dimension_numbers = #tpu.dot_dimension_numbers<[2], [1], [1], [2], [0, 0, 0, 1, 1, 2], [0], [0]>} : vector<1x16x16xf32>, vector<1x16x32xf32>, vector<1x16x32xf32> -> vector<1x16x32xf32>
    "tpu.trace_stop"() : () -> ()
    %33 = arith.addf %0, %32 : vector<1x16x32xf32>
    %c0_12 = arith.constant 0 : index
    %c0_13 = arith.constant 0 : index
    %c0_14 = arith.constant 0 : index
    %34 = vector.load %arg4[%c0_12, %c0_13, %c0_14] : memref<1x16x32xf32, #tpu.memory_space<vmem>>, vector<1x16x32xf32>
    tpu.vector_store %arg4[%c0_12, %c0_13, %c0_14], %33 {strides = array<i32>} : memref<1x16x32xf32, #tpu.memory_space<vmem>>, vector<1x16x32xf32>,
    return
  }
  func.func @transform_0(%arg0: i32) -> (i32, i32, i32) {
    %c0_i32 = arith.constant 0 : i32
    %c0_i32_0 = arith.constant 0 : i32
    %c0_i32_1 = arith.constant 0 : i32
    return %arg0, %c0_i32, %c0_i32_0 : i32, i32, i32
  }
  func.func @transform_1(%arg0: i32) -> (i32, i32) {
    %c0_i32 = arith.constant 0 : i32
    %c0_i32_0 = arith.constant 0 : i32
    %c0_i32_1 = arith.constant 0 : i32
    return %c0_i32, %c0_i32_0 : i32, i32
  }
  func.func @transform_2(%arg0: i32) -> (i32, i32) {
    %c0_i32 = arith.constant 0 : i32
    %c0_i32_0 = arith.constant 0 : i32
    %c0_i32_1 = arith.constant 0 : i32
    return %c0_i32, %c0_i32_0 : i32, i32
  }
  func.func @transform_3(%arg0: i32) -> (i32, i32, i32) {
    %c0_i32 = arith.constant 0 : i32
    %c0_i32_0 = arith.constant 0 : i32
    %c0_i32_1 = arith.constant 0 : i32
    return %arg0, %c0_i32, %c0_i32_0 : i32, i32, i32
  }
}

</mosaic_0001>

<llo_original>
// kernel: tpu_custom_call.1
$region0: #{tpu_custom_call.1}
  #allocation0 [shape = 'u32[]', space=smem, size = 0x4, offset = 0x4, fixed_abs, tag = 'smem constant byte address 0x4 - core index']
  #allocation1 [shape = 'u32[144,128]{1,0:T(1,128)}', space=vmem, size = 0x12000, scoped, tag = 'internal scratch']
  %s0 = inlined_call_operand.hbm [shape: f32[2,16,32], index: 0, kind: input, shape index: {}]
  %s1 = inlined_call_operand.hbm [shape: f32[32,64], index: 1, kind: input, shape index: {}]
  %s2 = inlined_call_operand.vmem [shape: f32[1,64], index: 2, kind: input, shape index: {}]
  %s3 = inlined_call_operand.hbm [shape: f32[2,16,32], index: 3, kind: output, shape index: {}]
  %s4 = sld [smem:[#allocation0]]
  $region53: #{tpu_custom_call.1} parent=0
    _
  %s6 = ssub.s32 1, %s4
  %s7 = scalar_select 0, %s6, %s4
  $region1: #{tpu_custom_call.1} parent=0
    #allocation2 [shape = 'u8[16384]{0}', space=vmem, size = 0x4000, scoped, tag = 'input window, operand 0']
    #allocation3 [shape = 's32[2]{0}', space=sflag, size = 0x8, scoped, tag = 'scoped memory for tpu_custom_call.1']
    #allocation4 [shape = 's32[2]{0}', space=sflag, size = 0x8, scoped, tag = 'scoped memory for tpu_custom_call.1']
    #allocation5 [shape = 'u8[16384]{0}', space=vmem, size = 0x4000, scoped, tag = 'input window, operand 1, single buffered']
    #allocation6 [shape = 's32[1]{0}', space=sflag, size = 0x4, scoped, tag = 'scoped memory for tpu_custom_call.1']
    #allocation7 [shape = 'u8[16384]{0}', space=vmem, size = 0x4000, scoped, tag = 'output window, operand 0']
    %8 = vsyncpa [#allocation3], 0
    %s9 = scalar_lea.sflag [#allocation3], 1
    %10 = vsyncpa %s9, 0
    %11 = vsyncpa [#allocation6], 0
    %12 = vsyncpa [#allocation4], 0
    %s13 = scalar_lea.sflag [#allocation4], 1
    %14 = vsyncpa %s13, 0
    loop: start=0, step=1, limit=4
    $region2: #{tpu_custom_call.1} parent=1 // loop_pre_header
      _
    $region3: #{tpu_custom_call.1} parent=1 // loop_header
      %s16 = sphi 0, %s20
      %p17 = scmp.ge.s32.totalorder %s16, 4
      %s26 = sphi 0, %s28
      %s29 = sphi 0, %s26
      %s30 = sphi 0, %s29
      %s46 = sphi 0, %s30
      %s50 = sphi 0, %s50
      %s52 = sphi 0, %s50
      %s53 = sphi 0, %s52
      %s67 = sphi 0, %s53
      %s71 = sphi 0, %s71
      %s73 = sphi 0, %s71
      %s74 = sphi 0, %s73
      %s88 = sphi 0, %s74
      %s94 = sphi 0, %s96
      %s97 = sphi 0, %s94
      %s98 = sphi 0, %s97
      %s114 = sphi 0, %s98
    $region4: #{tpu_custom_call.1} parent=1 // loop_header_branch
      %19 = sbr.rel (%p17) target = $region8
    $region5: #{tpu_custom_call.1} parent=1 // loop_body
      %s21 = ssub.s32 %s16, 1
      %s22 = ssub.s32 %s16, 2
      %s23 = sadd.s32 %s16, 1
      %s24 = ssub.s32 %s16, %s23
      %p25 = scmp.eq.s32.totalorder %s24, 0
      %s27 = sadd.s32 %s26, 1
      %s28 = scalar_select %p25, %s26, %s27
      %p31 = pneg %p25
      %p32 = scmp.eq.s32.totalorder %s16, 1
      %p33 = por %p31, %p32
      %p34 = scmp.ne.s32.totalorder %s26, %s29
      %p35 = scmp.eq.s32.totalorder %s16, 0
      %p36 = por %p34, %p35
      %p37 = scmp.ne.s32.totalorder %s26, %s29
      %p38 = scmp.eq.s32.totalorder %s21, 1
      %p39 = por %p37, %p38
      %p40 = scmp.ne.s32.totalorder %s29, %s30
      %p41 = scmp.eq.s32.totalorder %s21, 0
      %p42 = por %p40, %p41
      %p43 = scmp.ne.s32.totalorder %s29, %s30
      %p44 = scmp.eq.s32.totalorder %s22, 1
      %p45 = por %p43, %p44
      %p47 = scmp.ne.s32.totalorder %s30, %s46
      %p48 = scmp.eq.s32.totalorder %s22, 0
      %p49 = por %p47, %p48
      %s51 = sadd.s32 %s50, 1
      %p54 = scmp.eq.s32.totalorder %s16, 1
      %p55 = scmp.ne.s32.totalorder %s50, %s52
      %p56 = scmp.eq.s32.totalorder %s16, 0
      %p57 = por %p55, %p56
      %p58 = scmp.ne.s32.totalorder %s50, %s52
      %p59 = scmp.eq.s32.totalorder %s21, 1
      %p60 = por %p58, %p59
      %p61 = scmp.ne.s32.totalorder %s52, %s53
      %p62 = scmp.eq.s32.totalorder %s21, 0
      %p63 = por %p61, %p62
      %p64 = scmp.ne.s32.totalorder %s52, %s53
      %p65 = scmp.eq.s32.totalorder %s22, 1
      %p66 = por %p64, %p65
      %p68 = scmp.ne.s32.totalorder %s53, %s67
      %p69 = scmp.eq.s32.totalorder %s22, 0
      %p70 = por %p68, %p69
      %s72 = sadd.s32 %s71, 1
      %p75 = scmp.eq.s32.totalorder %s16, 1
      %p76 = scmp.ne.s32.totalorder %s71, %s73
      %p77 = scmp.eq.s32.totalorder %s16, 0
      %p78 = por %p76, %p77
      %p79 = scmp.ne.s32.totalorder %s71, %s73
      %p80 = scmp.eq.s32.totalorder %s21, 1
      %p81 = por %p79, %p80
      %p82 = scmp.ne.s32.totalorder %s73, %s74
      %p83 = scmp.eq.s32.totalorder %s21, 0
      %p84 = por %p82, %p83
      %p85 = scmp.ne.s32.totalorder %s73, %s74
      %p86 = scmp.eq.s32.totalorder %s22, 1
      %p87 = por %p85, %p86
      %p89 = scmp.ne.s32.totalorder %s74, %s88
      %p90 = scmp.eq.s32.totalorder %s22, 0
      %p91 = por %p89, %p90
      %s92 = ssub.s32 %s16, %s23
      %p93 = scmp.eq.s32.totalorder %s92, 0
      %s95 = sadd.s32 %s94, 1
      %s96 = scalar_select %p93, %s94, %s95
      %p99 = pneg %p93
      %p100 = scmp.eq.s32.totalorder %s16, 1
      %p101 = por %p99, %p100
      %p102 = scmp.ne.s32.totalorder %s94, %s97
      %p103 = scmp.eq.s32.totalorder %s16, 0
      %p104 = por %p102, %p103
      %p105 = scmp.ne.s32.totalorder %s94, %s97
      %p106 = scmp.eq.s32.totalorder %s21, 1
      %p107 = por %p105, %p106
      %p108 = scmp.ne.s32.totalorder %s97, %s98
      %p109 = scmp.eq.s32.totalorder %s21, 0
      %p110 = por %p108, %p109
      %p111 = scmp.ne.s32.totalorder %s97, %s98
      %p112 = scmp.eq.s32.totalorder %s22, 1
      %p113 = por %p111, %p112
      %p115 = scmp.ne.s32.totalorder %s98, %s114
      %p116 = scmp.eq.s32.totalorder %s22, 0
      %p117 = por %p115, %p116
      %p118 = scmp.le.s32.totalorder 1, %s16
      %p119 = scmp.lt.s32.totalorder %s16, 3
      %p120 = pnand %p118, %p119
      %p121 = pneg %p120
      // Predicated region
      $region9: #{tpu_custom_call.1} parent=5 // pred_check
        _
      $region10: #{tpu_custom_call.1} parent=5 // pred_check_branch
        %123 = sbr.rel (%p120) target = $region12
      $region11: #{tpu_custom_call.1} parent=5 // pred_region
        %s124 = ssub.s32 %s16, 1
        // Predicated region
        $region13: #{tpu_custom_call.1} parent=11 // pred_check
          %p125 = pneg %p63
        $region14: #{tpu_custom_call.1} parent=11 // pred_check_branch
          %127 = sbr.rel (%p125) target = $region16
        $region15: #{tpu_custom_call.1} parent=11 // pred_region
          %s129 = ssub.s32 512, 512
          %130 = vsyncadd [#allocation6], %s129
          %s131 = sshll.u32 [#allocation5], 4
          %s132 = int_to_ptr.vmem [resolvable:$true] %s131
          %137 = dma.hbm_to_vmem [thread:$0]  %s1, 512, %s132, [#allocation6], 128, 128, 8
        $region16: #{tpu_custom_call.1} parent=11 // pred_fallthru
          _
        // Predicated region
        $region17: #{tpu_custom_call.1} parent=11 // pred_check
          %p138 = pneg %p84
        $region18: #{tpu_custom_call.1} parent=11 // pred_check_branch
          %140 = sbr.rel (%p138) target = $region20
        $region19: #{tpu_custom_call.1} parent=11 // pred_region
          _
        $region20: #{tpu_custom_call.1} parent=11 // pred_fallthru
          _
      $region12: #{tpu_custom_call.1} parent=5 // pred_fallthru
        _
      %p141 = scmp.lt.s32.totalorder %s16, 2
      // Predicated region
      $region21: #{tpu_custom_call.1} parent=5 // pred_check
        %p142 = pneg %p141
      $region22: #{tpu_custom_call.1} parent=5 // pred_check_branch
        %144 = sbr.rel (%p142) target = $region24
      $region23: #{tpu_custom_call.1} parent=5 // pred_region
        // Predicated region
        $region25: #{tpu_custom_call.1} parent=23 // pred_check
          %p145 = pneg %p36
        $region26: #{tpu_custom_call.1} parent=23 // pred_check_branch
          %147 = sbr.rel (%p145) target = $region28
        $region27: #{tpu_custom_call.1} parent=23 // pred_region
          %s148 = sand.u32 %s26, 1
          %s149 = scalar_lea.sflag [#allocation3], %s148
          %s150 = sand.u32 %s26, 1
          %s151 = smul.addr %s150, 16
          %s152 = scalar_lea.vmem [#allocation2], %s151
          %s154 = ssub.s32 256, 256
          %155 = vsyncadd %s149, %s154
          %s156 = smul.addr %s16, 2
          %s157 = smul.addr %s156, 128
          %s158 = scalar_lea.hbm %s0, %s157
          %s159 = sshll.u32 %s152, 4
          %s160 = int_to_ptr.vmem [resolvable:$true] %s159
          %165 = dma.hbm_to_vmem [thread:$0]  %s158, 256, %s160, %s149, 128, 128, 8
        $region28: #{tpu_custom_call.1} parent=23 // pred_fallthru
          _
      $region24: #{tpu_custom_call.1} parent=5 // pred_fallthru
        _
      %p166 = scmp.le.s32.totalorder 1, %s16
      %p167 = scmp.lt.s32.totalorder %s16, 3
      %p168 = pnand %p166, %p167
      %p169 = pneg %p168
      // Predicated region
      $region29: #{tpu_custom_call.1} parent=5 // pred_check
        _
      $region30: #{tpu_custom_call.1} parent=5 // pred_check_branch
        %171 = sbr.rel (%p168) target = $region32
      $region31: #{tpu_custom_call.1} parent=5 // pred_region
        %s172 = ssub.s32 %s16, 1
        %s173 = sand.u32 %s29, 1
        %s174 = scalar_lea.sflag [#allocation3], %s173
        %s175 = sand.u32 %s29, 1
        %s176 = smul.addr %s175, 16
        %s177 = scalar_lea.vmem [#allocation2], %s176
        // Predicated region
        $region33: #{tpu_custom_call.1} parent=31 // pred_check
          %p178 = pneg %p42
        $region34: #{tpu_custom_call.1} parent=31 // pred_check_branch
          %180 = sbr.rel (%p178) target = $region36
        $region35: #{tpu_custom_call.1} parent=31 // pred_region
          %181 = dma.done %s174, 256
        $region36: #{tpu_custom_call.1} parent=31 // pred_fallthru
          _
        // Predicated region
        $region37: #{tpu_custom_call.1} parent=31 // pred_check
          %p182 = pneg %p63
        $region38: #{tpu_custom_call.1} parent=31 // pred_check_branch
          %184 = sbr.rel (%p182) target = $region40
        $region39: #{tpu_custom_call.1} parent=31 // pred_region
          %185 = dma.done [#allocation6], 512
        $region40: #{tpu_custom_call.1} parent=31 // pred_fallthru
          _
        %s186 = sand.u32 %s29, 1
        %s187 = scalar_lea.sflag [#allocation3], %s186
        %s188 = sand.u32 %s29, 1
        %s189 = smul.addr %s188, 16
        %s190 = scalar_lea.vmem [#allocation2], %s189
        %p191 = pneg %p42
        %p192 = pneg %p39
        %p193 = pneg %p63
        %p194 = pneg %p60
        %p195 = pneg %p84
        %p196 = pneg %p81
        %p197 = pneg %p110
        %p198 = pneg %p107
        %s199 = sand.u32 %s97, 1
        %s200 = scalar_lea.sflag [#allocation4], %s199
        %s201 = sand.u32 %s97, 1
        %s202 = smul.addr %s201, 16
        %s203 = scalar_lea.vmem [#allocation7], %s202
        %v204 = vld [vmem:[%s177] sm:$0xff]
        %v205 = vld [vmem:[%s177 + $0x8] sm:$0xff]
        %v206 = vld [vmem:[#allocation5] sm:$0xff]
        %v207 = vld [vmem:[#allocation5 + $0x8] sm:$0xff]
        %v208 = vld [vmem:[#allocation5 + $0x10] sm:$0xff]
        %v209 = vld [vmem:[#allocation5 + $0x18] sm:$0xff]
        %v210 = vld [vmem:[%s2] sm:$0x1]
        %v212 = vlaneseq
        %v213 = vshrl.u32 %v212, 7
        %v214 = vsub.s32 0, %v213
        %v215 = vrot.slane %v210, %v214
        %vm217 = vcmask 261120
        %v219 = vsel %vm217, %v204, 0
        %v222 = vsel %vm217, %v205, 0
        %224 = vmatprep.subr.mxu0 0.0
        %225 = vmatpush1.msra.mxu0 %v206
        %226 = vmatprep.subr.mxu0 0.0
        %227 = vmatpush1.msra.mxu0 %v207
        %228 = vmatprep.subr.mxu0 0.0
        %229 = vmatpush1.msra.mxu0 %v208
        %230 = vmatprep.subr.mxu0 0.0
        %231 = vmatpush1.msra.mxu0 %v209
        %232 = vmatprep.subr.mxu0 0.0
        %233 = vmatpush1.msra.mxu0 0.0
        %234 = vmatprep.subr.mxu0 0.0
        %235 = vmatpush1.msra.mxu0 0.0
        %236 = vmatprep.subr.mxu0 0.0
        %237 = vmatpush1.msra.mxu0 0.0
        %238 = vmatprep.subr.mxu0 0.0
        %239 = vmatpush1.msra.mxu0 0.0
        %240 = vmatprep.subr.mxu0 0.0
        %241 = vmatpush1.msra.mxu0 0.0
        %242 = vmatprep.subr.mxu0 0.0
        %243 = vmatpush1.msra.mxu0 0.0
        %244 = vmatprep.subr.mxu0 0.0
        %245 = vmatpush1.msra.mxu0 0.0
        %246 = vmatprep.subr.mxu0 0.0
        %247 = vmatpush1.msra.mxu0 0.0
        %248 = vmatprep.subr.mxu0 0.0
        %249 = vmatpush1.msra.mxu0 0.0
        %250 = vmatprep.subr.mxu0 0.0
        %251 = vmatpush1.msra.mxu0 0.0
        %252 = vmatprep.subr.mxu0 0.0
        %253 = vmatpush1.msra.mxu0 0.0
        %254 = vmatprep.subr.mxu0 0.0
        %255 = vmatpush1.msra.mxu0 0.0
        %256 = vmatprep.subr.mxu0 0.0
        %257 = vmatpush1.msra.mxu0 0.0
        %258 = vmatprep.subr.mxu0 0.0
        %259 = vmatpush1.msra.mxu0 0.0
        %260 = vmatprep.subr.mxu0 0.0
        %261 = vmatpush1.msra.mxu0 0.0
        %262 = vmatprep.subr.mxu0 0.0
        %263 = vmatpush1.msra.mxu0 0.0
        %264 = vmatprep.subr.mxu0 0.0
        %265 = vmatpush1.msra.mxu0 0.0
        %266 = vmatprep.subr.mxu0 0.0
        %267 = vmatpush1.msra.mxu0 0.0
        %268 = vmatprep.subr.mxu0 0.0
        %269 = vmatpush1.msra.mxu0 0.0
        %270 = vmatprep.subr.mxu0 0.0
        %271 = vmatpush1.msra.mxu0 0.0
        %272 = vmatprep.subr.mxu0 0.0
        %273 = vmatpush1.msra.mxu0 0.0
        %274 = vmatprep.subr.mxu0 0.0
        %275 = vmatpush1.msra.mxu0 0.0
        %276 = vmatprep.subr.mxu0 0.0
        %277 = vmatpush1.msra.mxu0 0.0
        %278 = vmatprep.subr.mxu0 0.0
        %279 = vmatpush1.msra.mxu0 0.0
        %280 = vmatprep.subr.mxu0 0.0
        %281 = vmatpush1.msra.mxu0 0.0
        %282 = vmatprep.subr.mxu0 0.0
        %283 = vmatpush1.msra.mxu0 0.0
        %284 = vmatprep.subr.mxu0 0.0
        %285 = vmatpush1.msra.mxu0 0.0
        %286 = vmatprep.subr.mxu0 0.0
        %287 = vmatpush1.msra.mxu0 0.0
        %288 = vmatprep.mubr.f32.mxu0 0.0
        %289 = vmatmul.mubr.f32.gmra.mrb[0].mxu0 %v219
        %v290 = vpop.f32.mrb[0].mxu0
        %v291 = vadd.f32 %v215, %v290
        %v292 = vpop.f32.mrb[0].mxu0
        %293 = vmatprep.mubr.f32.mxu0 0.0
        %294 = vmatmul.mubr.f32.gmra.mrb[0].mxu0 %v222
        %v295 = vpop.f32.mrb[0].mxu0
        %v296 = vadd.f32 %v215, %v295
        %v297 = vpop.f32.mrb[0].mxu0
        %298 = vdwg.mxu0
        %301 = vrot.lane.b32.xlu0 %v291, 112
        %v302 = vpop.permute.xlu0 %301
        %303 = vrot.lane.b32.xlu0 %v296, 112
        %v304 = vpop.permute.xlu0 %303
        %vm305 = vcmask 130048
        %v306 = vsel %vm305, %v302, 0
        %v308 = vsel %vm305, %v304, 0
        %v310 = vsel %vm305, %v291, 0
        %v312 = vsel %vm305, %v296, 0
        %314 = vmatprep.subr.mxu0 0.0
        %315 = vmatpush1.xpose.msra.mxu0 %v310
        %316 = vmatprep.subr.mxu0 0.0
        %317 = vmatpush1.xpose.msra.mxu0 %v312
        %318 = vmatprep.subr.mxu0 0.0
        %319 = vmatpush1.xpose.msra.mxu0 0.0
        %320 = vmatprep.subr.mxu0 0.0
        %321 = vmatpush1.xpose.msra.mxu0 0.0
        %322 = vmatprep.subr.mxu0 0.0
        %323 = vmatpush1.xpose.msra.mxu0 0.0
        %324 = vmatprep.subr.mxu0 0.0
        %325 = vmatpush1.xpose.msra.mxu0 0.0
        %326 = vmatprep.subr.mxu0 0.0
        %327 = vmatpush1.xpose.msra.mxu0 0.0
        %328 = vmatprep.subr.mxu0 0.0
        %329 = vmatpush1.xpose.msra.mxu0 0.0
        %330 = vmatprep.subr.mxu0 0.0
        %331 = vmatpush1.xpose.msra.mxu0 0.0
        %332 = vmatprep.subr.mxu0 0.0
        %333 = vmatpush1.xpose.msra.mxu0 0.0
        %334 = vmatprep.subr.mxu0 0.0
        %335 = vmatpush1.xpose.msra.mxu0 0.0
        %336 = vmatprep.subr.mxu0 0.0
        %337 = vmatpush1.xpose.msra.mxu0 0.0
        %338 = vmatprep.subr.mxu0 0.0
        %339 = vmatpush1.xpose.msra.mxu0 0.0
        %340 = vmatprep.subr.mxu0 0.0
        %341 = vmatpush1.xpose.msra.mxu0 0.0
        %342 = vmatprep.subr.mxu0 0.0
        %343 = vmatpush1.xpose.msra.mxu0 0.0
        %344 = vmatprep.subr.mxu0 0.0
        %345 = vmatpush1.xpose.msra.mxu0 0.0
        %346 = vmatprep.subr.mxu0 0.0
        %347 = vmatpush1.xpose.msra.mxu0 0.0
        %348 = vmatprep.subr.mxu0 0.0
        %349 = vmatpush1.xpose.msra.mxu0 0.0
        %350 = vmatprep.subr.mxu0 0.0
        %351 = vmatpush1.xpose.msra.mxu0 0.0
        %352 = vmatprep.subr.mxu0 0.0
        %353 = vmatpush1.xpose.msra.mxu0 0.0
        %354 = vmatprep.subr.mxu0 0.0
        %355 = vmatpush1.xpose.msra.mxu0 0.0
        %356 = vmatprep.subr.mxu0 0.0
        %357 = vmatpush1.xpose.msra.mxu0 0.0
        %358 = vmatprep.subr.mxu0 0.0
        %359 = vmatpush1.xpose.msra.mxu0 0.0
        %360 = vmatprep.subr.mxu0 0.0
        %361 = vmatpush1.xpose.msra.mxu0 0.0
        %362 = vmatprep.subr.mxu0 0.0
        %363 = vmatpush1.xpose.msra.mxu0 0.0
        %364 = vmatprep.subr.mxu0 0.0
        %365 = vmatpush1.xpose.msra.mxu0 0.0
        %366 = vmatprep.subr.mxu0 0.0
        %367 = vmatpush1.xpose.msra.mxu0 0.0
        %368 = vmatprep.subr.mxu0 0.0
        %369 = vmatpush1.xpose.msra.mxu0 0.0
        %370 = vmatprep.subr.mxu0 0.0
        %371 = vmatpush1.xpose.msra.mxu0 0.0
        %372 = vmatprep.subr.mxu0 0.0
        %373 = vmatpush1.xpose.msra.mxu0 0.0
        %374 = vmatprep.subr.mxu0 0.0
        %375 = vmatpush1.xpose.msra.mxu0 0.0
        %376 = vmatprep.subr.mxu0 0.0
        %377 = vmatpush1.xpose.msra.mxu0 0.0
        %378 = vmatprep.mubr.f32.mxu0 0.0
        %379 = vmatmul.mubr.f32.gmra.mrb[0].mxu0 %v306
        %v380 = vpop.f32.mrb[0].mxu0
        %v381 = vadd.f32 0.0, %v380
        %v382 = vpop.f32.mrb[0].mxu0
        %383 = vmatprep.mubr.f32.mxu0 0.0
        %384 = vmatmul.mubr.f32.gmra.mrb[0].mxu0 %v308
        %v385 = vpop.f32.mrb[0].mxu0
        %v386 = vadd.f32 0.0, %v385
        %v387 = vpop.f32.mrb[0].mxu0
        %388 = vdwg.mxu0
        %v389 = vlaneseq
        %v390 = vshrl.u32 %v389, 7
        %v391 = vadd.s32 %v390, 8
        %v392 = vlaneseq
        %v393 = vand.u32 %v392, 127
        %vm394 = vcmp.le.s32.totalorder %v393, %v390
        %vm395 = vcmp.le.s32.totalorder %v393, %v391
        %v396 = vsel %vm394, %v381, -1e+30
        %v397 = vsel %vm395, %v386, -1e+30
        %v398 = vsel %vm305, %v396, -inf
        %v399 = vsel %vm305, %v397, -inf
        %v400 = vmax.f32 %v398, %v399
        %v401 = vrot.slane %v400, 4
        %v402 = vmax.f32 %v400, %v401
        %v403 = vrot.slane %v402, 2
        %v404 = vmax.f32 %v402, %v403
        %v405 = vrot.slane %v404, 1
        %v406 = vmax.f32 %v404, %v405
        %v407 = vsub.f32 %v396, %v406
        %v408 = vsub.f32 %v397, %v406
        %v409 = vmul.f32 %v407, 1.442695
        %v410 = vpow.pop %v409
        %v411 = vmul.f32 %v408, 1.442695
        %v412 = vpow.pop %v411
        %v413 = vsel %vm305, %v410, 0.0
        %v414 = vsel %vm305, %v412, 0.0
        %v415 = vadd.f32 %v413, %v414
        %v416 = vrot.slane %v415, 4
        %v417 = vadd.f32 %v415, %v416
        %v418 = vrot.slane %v417, 2
        %v419 = vadd.f32 %v417, %v418
        %v420 = vrot.slane %v419, 1
        %v421 = vadd.f32 %v419, %v420
        %v422 = vrcp.pop %v421
        %v423 = vmul.f32 %v422, 0.25
        %v424 = vmul.f32 %v410, %v423
        %v425 = vmul.f32 %v412, %v423
        %426 = vrot.lane.b32.xlu0 %v291, 96
        %v427 = vpop.permute.xlu0 %426
        %428 = vrot.lane.b32.xlu0 %v296, 96
        %v429 = vpop.permute.xlu0 %428
        %v433 = vsel %vm305, %v424, 0
        %v436 = vsel %vm305, %v425, 0
        %438 = vmatprep.subr.mxu0 0.0
        %439 = vmatpush1.msra.mxu0 %v427
        %440 = vmatprep.subr.mxu0 0.0
        %441 = vmatpush1.msra.mxu0 %v429
        %442 = vmatprep.subr.mxu0 0.0
        %443 = vmatpush1.msra.mxu0 0.0
        %444 = vmatprep.subr.mxu0 0.0
        %445 = vmatpush1.msra.mxu0 0.0
        %446 = vmatprep.subr.mxu0 0.0
        %447 = vmatpush1.msra.mxu0 0.0
        %448 = vmatprep.subr.mxu0 0.0
        %449 = vmatpush1.msra.mxu0 0.0
        %450 = vmatprep.subr.mxu0 0.0
        %451 = vmatpush1.msra.mxu0 0.0
        %452 = vmatprep.subr.mxu0 0.0
        %453 = vmatpush1.msra.mxu0 0.0
        %454 = vmatprep.subr.mxu0 0.0
        %455 = vmatpush1.msra.mxu0 0.0
        %456 = vmatprep.subr.mxu0 0.0
        %457 = vmatpush1.msra.mxu0 0.0
        %458 = vmatprep.subr.mxu0 0.0
        %459 = vmatpush1.msra.mxu0 0.0
        %460 = vmatprep.subr.mxu0 0.0
        %461 = vmatpush1.msra.mxu0 0.0
        %462 = vmatprep.subr.mxu0 0.0
        %463 = vmatpush1.msra.mxu0 0.0
        %464 = vmatprep.subr.mxu0 0.0
        %465 = vmatpush1.msra.mxu0 0.0
        %466 = vmatprep.subr.mxu0 0.0
        %467 = vmatpush1.msra.mxu0 0.0
        %468 = vmatprep.subr.mxu0 0.0
        %469 = vmatpush1.msra.mxu0 0.0
        %470 = vmatprep.subr.mxu0 0.0
        %471 = vmatpush1.msra.mxu0 0.0
        %472 = vmatprep.subr.mxu0 0.0
        %473 = vmatpush1.msra.mxu0 0.0
        %474 = vmatprep.subr.mxu0 0.0
        %475 = vmatpush1.msra.mxu0 0.0
        %476 = vmatprep.subr.mxu0 0.0
        %477 = vmatpush1.msra.mxu0 0.0
        %478 = vmatprep.subr.mxu0 0.0
        %479 = vmatpush1.msra.mxu0 0.0
        %480 = vmatprep.subr.mxu0 0.0
        %481 = vmatpush1.msra.mxu0 0.0
        %482 = vmatprep.subr.mxu0 0.0
        %483 = vmatpush1.msra.mxu0 0.0
        %484 = vmatprep.subr.mxu0 0.0
        %485 = vmatpush1.msra.mxu0 0.0
        %486 = vmatprep.subr.mxu0 0.0
        %487 = vmatpush1.msra.mxu0 0.0
        %488 = vmatprep.subr.mxu0 0.0
        %489 = vmatpush1.msra.mxu0 0.0
        %490 = vmatprep.subr.mxu0 0.0
        %491 = vmatpush1.msra.mxu0 0.0
        %492 = vmatprep.subr.mxu0 0.0
        %493 = vmatpush1.msra.mxu0 0.0
        %494 = vmatprep.subr.mxu0 0.0
        %495 = vmatpush1.msra.mxu0 0.0
        %496 = vmatprep.subr.mxu0 0.0
        %497 = vmatpush1.msra.mxu0 0.0
        %498 = vmatprep.subr.mxu0 0.0
        %499 = vmatpush1.msra.mxu0 0.0
        %500 = vmatprep.subr.mxu0 0.0
        %501 = vmatpush1.msra.mxu0 0.0
        %502 = vmatprep.mubr.f32.mxu0 0.0
        %503 = vmatmul.mubr.f32.gmra.mrb[0].mxu0 %v433
        %v504 = vpop.f32.mrb[0].mxu0
        %v505 = vadd.f32 0.0, %v504
        %v506 = vpop.f32.mrb[0].mxu0
        %507 = vmatprep.mubr.f32.mxu0 0.0
        %508 = vmatmul.mubr.f32.gmra.mrb[0].mxu0 %v436
        %v509 = vpop.f32.mrb[0].mxu0
        %v510 = vadd.f32 0.0, %v509
        %v511 = vpop.f32.mrb[0].mxu0
        %512 = vdwg.mxu0
        %v513 = vadd.f32 %v204, %v505
        %v514 = vadd.f32 %v205, %v510
        %515 = vst.msk [vmem:[%s203] sm:$0xff] %vm217, %v513
        %516 = vst.msk [vmem:[%s203 + $0x8] sm:$0xff] %vm217, %v514
        %s517 = sand.u32 %s97, 1
        %s518 = scalar_lea.sflag [#allocation4], %s517
        %s519 = sand.u32 %s97, 1
        %s520 = smul.addr %s519, 16
        %s521 = scalar_lea.vmem [#allocation7], %s520
        // Predicated region
        $region41: #{tpu_custom_call.1} parent=31 // pred_check
          %p522 = pneg %p107
        $region42: #{tpu_custom_call.1} parent=31 // pred_check_branch
          %524 = sbr.rel (%p522) target = $region44
        $region43: #{tpu_custom_call.1} parent=31 // pred_region
          %s526 = ssub.s32 256, 256
          %527 = vsyncadd %s518, %s526
          %s528 = smul.addr %s21, 2
          %s529 = smul.addr %s528, 128
          %s530 = scalar_lea.hbm %s3, %s529
          %s531 = sshll.u32 %s521, 4
          %s532 = int_to_ptr.vmem [resolvable:$true] %s531
          %537 = dma.vmem_to_hbm [thread:$0]  %s532, 256, %s530, %s518, 128, 128, 8
        $region44: #{tpu_custom_call.1} parent=31 // pred_fallthru
          _
      $region32: #{tpu_custom_call.1} parent=5 // pred_fallthru
        _
      %p538 = scmp.le.s32.totalorder 2, %s16
      // Predicated region
      $region45: #{tpu_custom_call.1} parent=5 // pred_check
        %p539 = pneg %p538
      $region46: #{tpu_custom_call.1} parent=5 // pred_check_branch
        %541 = sbr.rel (%p539) target = $region48
      $region47: #{tpu_custom_call.1} parent=5 // pred_region
        %s542 = ssub.s32 %s16, 2
        // Predicated region
        $region49: #{tpu_custom_call.1} parent=47 // pred_check
          %p543 = pneg %p113
        $region50: #{tpu_custom_call.1} parent=47 // pred_check_branch
          %545 = sbr.rel (%p543) target = $region52
        $region51: #{tpu_custom_call.1} parent=47 // pred_region
          %s546 = sand.u32 %s98, 1
          %s547 = scalar_lea.sflag [#allocation4], %s546
          %s548 = sand.u32 %s98, 1
          %s549 = smul.addr %s548, 16
          %s550 = scalar_lea.vmem [#allocation7], %s549
          %551 = dma.done %s547, 256
        $region52: #{tpu_custom_call.1} parent=47 // pred_fallthru
          _
      $region48: #{tpu_custom_call.1} parent=5 // pred_fallthru
        _
    $region6: #{tpu_custom_call.1} parent=1 // loop_footer
      %s20 = sadd.s32 1, %s16
    $region7: #{tpu_custom_call.1} parent=1 // loop_footer_branch
      %15 = sbr.rel target = $region3
    $region8: #{tpu_custom_call.1} parent=1 // loop_exit
      _
    %552 = vsyncpa [#allocation3], 1
    %s553 = scalar_lea.sflag [#allocation3], 1
    %554 = vsyncpa %s553, 1
    %555 = vsyncpa [#allocation6], 1
    %556 = vsyncpa [#allocation4], 1
    %s557 = scalar_lea.sflag [#allocation4], 1
    %558 = vsyncpa %s557, 1

</llo_original>
